<compile_context>
chip_gen: v7x
topology: tpu7x:2x2x1
jax: 0.10.0
libtpu: 0.0.40
codegen_flags: <defaults>
</compile_context>

<pallas_src>
import functools

import jax
import jax.numpy as jnp
from jax import lax
from jax.experimental import pallas as pl
from jax.experimental.pallas import tpu as pltpu


def _round_up(n, m):
    return ((n + m - 1) // m) * m


def _disc_rkhs_kernel(x_ref, noise_ref, w1_ref, b1_ref, w2_ref, b2_ref,
                      theta_ref, lt_ref, mmat_ref,
                      result_ref, phi_ref, mult_ref, *, matmul_dtype):
    cdt = matmul_dtype
    x = x_ref[...].astype(cdt)                                   # (TN, d)

    # fc1 + relu (f32 accumulation on the MXU)
    h1 = jnp.maximum(
        jnp.dot(x, w1_ref[...], preferred_element_type=jnp.float32)
        + b1_ref[...], 0.0)
    # fc2 + relu -> phi
    phi = jnp.maximum(
        jnp.dot(h1.astype(cdt), w2_ref[...], preferred_element_type=jnp.float32)
        + b2_ref[...], 0.0)                                      # (TN, H) f32
    phi_ref[...] = phi.astype(phi_ref.dtype)

    # cov = tensordot(noise, L, ([1],[1])) == noise @ L.T ; L_T pre-transposed.
    cov = jnp.dot(noise_ref[...].astype(cdt), lt_ref[...],
                  preferred_element_type=jnp.float32)            # (TN, H)
    w = theta_ref[...] + cov

    # result[n] = phi[n] . w[n]  (bmm of (N,1,H) x (N,H,1)).
    # Lane-dense form: contract prod(TN,H) with ones(8,H) over H on the MXU
    # -> (8, TN); row 0 holds the per-row sums laid out across lanes.  This
    # avoids the lane-sparse (TN,1) column (masked stores + heavy vreg use).
    prod = phi * w
    ones8 = jnp.ones((8, prod.shape[1]), jnp.float32)
    res8 = lax.dot_general(ones8, prod, (((1,), (1,)), ((), ())),
                           preferred_element_type=jnp.float32)   # (8, TN)
    result_ref[...] = res8[0:1, :]

    # multiplied = tensordot(phi, M, ([1],[1])) == phi @ M^T == phi @ M
    # (M = theta^T theta + L L^T is symmetric, precomputed in the wrapper).
    mult_ref[...] = jnp.dot(phi.astype(cdt), mmat_ref[...],
                            preferred_element_type=jnp.float32)


@functools.partial(jax.jit, static_argnames=("block_n", "matmul_dtype"))
def discriminator_rkhs_forward(x, params, noise, *, block_n=None,
                               matmul_dtype=jnp.bfloat16):
    N, d = x.shape
    H = params["theta"].shape[1]

    # --- N-independent parameter math, hoisted out of the kernel -------------
    theta = params["theta"].astype(jnp.float32)                  # (1, H)
    L = params["L"].astype(jnp.float32)                          # (H, H)
    M = theta.T @ theta + L @ L.T                                # (H, H), symmetric
    w1 = params["w1"].astype(matmul_dtype)
    w2 = params["w2"].astype(matmul_dtype)
    lt = L.T.astype(matmul_dtype)
    mmat = M.astype(matmul_dtype)
    b1 = params["b1"].astype(jnp.float32)
    b2 = params["b2"].astype(jnp.float32)

    # --- batch tiling: no padding, ragged last block is write-masked ---------
    if block_n is None:
        kind = jax.devices()[0].device_kind.lower()
        block_n = 4096 if "7" in kind else 2048      # v7x: 3.2 TB/s HBM
    block_n = max(128, _round_up(int(block_n), 128))
    if N <= 256:
        tn = N          # one full-extent block: every block dim == array dim
    else:
        # multiple of 128 (keeps the lane-dense result blocks legal & unmasked)
        # and >= 2 grid steps so both v7x TensorCores get work.
        tn = min(block_n, _round_up(pl.cdiv(N, 2), 128))
    grid_n = pl.cdiv(N, tn)

    stream = lambda shape: pl.BlockSpec(shape, lambda i: (i, 0))
    resident = lambda shape: pl.BlockSpec(shape, lambda i: (0, 0))

    out_shapes = (
        jax.ShapeDtypeStruct((1, grid_n * tn), jnp.float32),   # result (row)
        jax.ShapeDtypeStruct((N, H), jnp.float32),             # phi
        jax.ShapeDtypeStruct((N, H), jnp.float32),             # multiplied
    )

    result_row, phi, multiplied = pl.pallas_call(
        functools.partial(_disc_rkhs_kernel, matmul_dtype=matmul_dtype),
        out_shape=out_shapes,
        grid=(grid_n,),
        in_specs=[
            stream((tn, d)),        # x      (streamed; partial last block OK)
            stream((tn, H)),        # noise
            resident((d, H)),       # w1
            resident((1, H)),       # b1
            resident((H, H)),       # w2
            resident((1, H)),       # b2
            resident((1, H)),       # theta
            resident((H, H)),       # L^T
            resident((H, H)),       # M
        ],
        out_specs=(
            pl.BlockSpec((1, tn), lambda i: (0, i)),   # result: lane-dense row
            stream((tn, H)),                           # phi
            stream((tn, H)),                           # multiplied
        ),
        compiler_params=pltpu.CompilerParams(
            dimension_semantics=("parallel",),
            vmem_limit_bytes=40 * 1024 * 1024),
    )(x, noise, w1, b1, w2, b2, theta, lt, mmat)

    # Only the first N lanes of the result row are valid (rest are from the
    # ragged tail of the last block); this slice is O(N) floats, negligible.
    result = result_row[0, :N][:, None]
    return result, phi, multiplied


def init_params(key, d, n_hidden):
    k1, k2, k3, k4 = jax.random.split(key, 4)
    # xavier_normal_(gain=1.41) equivalents for the Linear weights.
    std1 = 1.41 * jnp.sqrt(2.0 / (d + n_hidden))
    std2 = 1.41 * jnp.sqrt(2.0 / (n_hidden + n_hidden))
    w1 = std1 * jax.random.normal(k1, (d, n_hidden), jnp.float32)   # (in, out)
    w2 = std2 * jax.random.normal(k2, (n_hidden, n_hidden), jnp.float32)
    b1 = jnp.zeros((1, n_hidden), jnp.float32)
    b2 = jnp.zeros((1, n_hidden), jnp.float32)
    theta = jax.random.normal(k3, (1, n_hidden), jnp.float32)       # N(0,1)
    L = jax.nn.initializers.orthogonal(scale=1.41)(
        k4, (n_hidden, n_hidden), jnp.float32)                      # orthogonal, gain 1.41
    return {"w1": w1, "b1": b1, "w2": w2, "b2": b2, "theta": theta, "L": L}


def _reference_forward(x, params, noise):
    h1 = jnp.maximum(x @ params["w1"] + params["b1"], 0.0)
    phi = jnp.maximum(h1 @ params["w2"] + params["b2"], 0.0)
    cov = noise @ params["L"].T
    w = params["theta"] + cov
    result = jnp.sum(phi * w, axis=1, keepdims=True)
    M = params["theta"].T @ params["theta"] + params["L"] @ params["L"].T
    multiplied = phi @ M.T
    return result, phi, multiplied


if __name__ == "__main__":
    key = jax.random.PRNGKey(0)
    k_param, k_x1, k_n1, k_x2, k_n2 = jax.random.split(key, 5)

    d, n_hidden = 128, 128                      # module defaults
    params = init_params(k_param, d, n_hidden)

    def run_case(kx, kn, N):
        x = jax.random.normal(kx, (N, d), jnp.float32)
        noise = jax.random.normal(kn, (N, n_hidden), jnp.float32)
        r_ref, p_ref, mul_ref = _reference_forward(x, params, noise)

        # Exact-f32 path: matches the PyTorch module numerics tightly.
        r, p, m = discriminator_rkhs_forward(x, params, noise,
                                             matmul_dtype=jnp.float32)
        jax.block_until_ready((r, p, m))
        assert r.shape == (N, 1)
        assert p.shape == (N, n_hidden)
        assert m.shape == (N, n_hidden)
        assert jnp.allclose(p, p_ref, rtol=1e-5, atol=1e-4)
        assert jnp.allclose(m, mul_ref, rtol=1e-5, atol=1e-4)
        assert jnp.allclose(r, r_ref, rtol=1e-4, atol=1e-2)
        for t in (r, p, m):
            assert bool(jnp.all(jnp.isfinite(t)))

        # Default perf path: bf16 matmul operands, f32 accumulation.
        rb, pb, mb = discriminator_rkhs_forward(x, params, noise)
        jax.block_until_ready((rb, pb, mb))

        def close(out, ref, rel):
            return bool(jnp.max(jnp.abs(out - ref))
                        <= rel * jnp.max(jnp.abs(ref)) + 1e-2)

        assert close(pb, p_ref, 0.05)
        assert close(mb, mul_ref, 0.05)
        assert close(rb, r_ref, 0.05)
        for t in (rb, pb, mb):
            assert bool(jnp.all(jnp.isfinite(t)))

    run_case(k_x1, k_n1, 50)     # N <= 256: single full-extent block, grid = 1
    run_case(k_x2, k_n2, 300)    # tn = 256, grid = 2, ragged (write-masked) tail

    print("KERNEL_OK")
</pallas_src>

<mosaic_0001>
module attributes {stable_mosaic.version = 11 : i64} {
  func.func @_disc_rkhs_kernel(%arg0: i32, %arg1: memref<50x128xf32, #tpu.memory_space<vmem>>, %arg2: memref<50x128xf32, #tpu.memory_space<vmem>>, %arg3: memref<128x128xf32, #tpu.memory_space<vmem>>, %arg4: memref<1x128xf32, #tpu.memory_space<vmem>>, %arg5: memref<128x128xf32, #tpu.memory_space<vmem>>, %arg6: memref<1x128xf32, #tpu.memory_space<vmem>>, %arg7: memref<1x128xf32, #tpu.memory_space<vmem>>, %arg8: memref<128x128xf32, #tpu.memory_space<vmem>>, %arg9: memref<128x128xf32, #tpu.memory_space<vmem>>, %arg10: memref<1x50xf32, #tpu.memory_space<vmem>>, %arg11: memref<50x128xf32, #tpu.memory_space<vmem>>, %arg12: memref<50x128xf32, #tpu.memory_space<vmem>>) attributes {dimension_semantics = [#tpu.dimension_semantics<parallel>], iteration_bounds = array<i64: 1>, scalar_prefetch = 0 : i64, scratch_operands = 0 : i64, tpu.core_type = #tpu.core_type<tc>, window_params = [{transform_indices = @transform_0, window_bounds = array<i64: 50, 128>}, {transform_indices = @transform_1, window_bounds = array<i64: 50, 128>}, {pipeline_mode = #tpu.pipeline_mode<synchronous>, transform_indices = @transform_2, window_bounds = array<i64: 128, 128>}, {pipeline_mode = #tpu.pipeline_mode<synchronous>, transform_indices = @transform_3, window_bounds = array<i64: 1, 128>}, {pipeline_mode = #tpu.pipeline_mode<synchronous>, transform_indices = @transform_4, window_bounds = array<i64: 128, 128>}, {pipeline_mode = #tpu.pipeline_mode<synchronous>, transform_indices = @transform_5, window_bounds = array<i64: 1, 128>}, {pipeline_mode = #tpu.pipeline_mode<synchronous>, transform_indices = @transform_6, window_bounds = array<i64: 1, 128>}, {pipeline_mode = #tpu.pipeline_mode<synchronous>, transform_indices = @transform_7, window_bounds = array<i64: 128, 128>}, {pipeline_mode = #tpu.pipeline_mode<synchronous>, transform_indices = @transform_8, window_bounds = array<i64: 128, 128>}, {transform_indices = @transform_9, window_bounds = array<i64: 1, 50>}, {transform_indices = @transform_10, window_bounds = array<i64: 50, 128>}, {transform_indices = @transform_11, window_bounds = array<i64: 50, 128>}]} {
    %c0 = arith.constant 0 : index
    %c0_0 = arith.constant 0 : index
    %0 = vector.load %arg1[%c0, %c0_0] : memref<50x128xf32, #tpu.memory_space<vmem>>, vector<50x128xf32>
    %c0_1 = arith.constant 0 : index
    %c0_2 = arith.constant 0 : index
    %1 = vector.load %arg3[%c0_1, %c0_2] : memref<128x128xf32, #tpu.memory_space<vmem>>, vector<128x128xf32>
    %cst = arith.constant dense<0.000000e+00> : vector<50x128xf32>
    %2 = tpu.matmul %0, %1, %cst {dimension_numbers = #tpu.dot_dimension_numbers<[1], [0], [0], [1], [0, 0, 1, 1], [], []>} : vector<50x128xf32>, vector<128x128xf32>, vector<50x128xf32> -> vector<50x128xf32>
    %c0_3 = arith.constant 0 : index
    %c0_4 = arith.constant 0 : index
    %3 = vector.load %arg4[%c0_3, %c0_4] : memref<1x128xf32, #tpu.memory_space<vmem>>, vector<1x128xf32>
    %4 = vector.broadcast %3 : vector<1x128xf32> to vector<50x128xf32>
    %5 = arith.addf %2, %4 : vector<50x128xf32>
    %cst_5 = arith.constant 0.000000e+00 : f32
    %6 = vector.broadcast %cst_5 : f32 to vector<50x128xf32>
    %7 = arith.maximumf %5, %6 : vector<50x128xf32>
    %c0_6 = arith.constant 0 : index
    %c0_7 = arith.constant 0 : index
    %8 = vector.load %arg5[%c0_6, %c0_7] : memref<128x128xf32, #tpu.memory_space<vmem>>, vector<128x128xf32>
    %cst_8 = arith.constant dense<0.000000e+00> : vector<50x128xf32>
    %9 = tpu.matmul %7, %8, %cst_8 {dimension_numbers = #tpu.dot_dimension_numbers<[1], [0], [0], [1], [0, 0, 1, 1], [], []>} : vector<50x128xf32>, vector<128x128xf32>, vector<50x128xf32> -> vector<50x128xf32>
    %c0_9 = arith.constant 0 : index
    %c0_10 = arith.constant 0 : index
    %10 = vector.load %arg6[%c0_9, %c0_10] : memref<1x128xf32, #tpu.memory_space<vmem>>, vector<1x128xf32>
    %11 = vector.broadcast %10 : vector<1x128xf32> to vector<50x128xf32>
    %12 = arith.addf %9, %11 : vector<50x128xf32>
    %cst_11 = arith.constant 0.000000e+00 : f32
    %13 = vector.broadcast %cst_11 : f32 to vector<50x128xf32>
    %14 = arith.maximumf %12, %13 : vector<50x128xf32>
    %c0_12 = arith.constant 0 : index
    %c0_13 = arith.constant 0 : index
    %15 = vector.load %arg11[%c0_12, %c0_13] : memref<50x128xf32, #tpu.memory_space<vmem>>, vector<50x128xf32>
    tpu.vector_store %arg11[%c0_12, %c0_13], %14 {strides = array<i32>} : memref<50x128xf32, #tpu.memory_space<vmem>>, vector<50x128xf32>,
    %c0_14 = arith.constant 0 : index
    %c0_15 = arith.constant 0 : index
    %16 = vector.load %arg2[%c0_14, %c0_15] : memref<50x128xf32, #tpu.memory_space<vmem>>, vector<50x128xf32>
    %c0_16 = arith.constant 0 : index
    %c0_17 = arith.constant 0 : index
    %17 = vector.load %arg8[%c0_16, %c0_17] : memref<128x128xf32, #tpu.memory_space<vmem>>, vector<128x128xf32>
    %cst_18 = arith.constant dense<0.000000e+00> : vector<50x128xf32>
    %18 = tpu.matmul %16, %17, %cst_18 {dimension_numbers = #tpu.dot_dimension_numbers<[1], [0], [0], [1], [0, 0, 1, 1], [], []>} : vector<50x128xf32>, vector<128x128xf32>, vector<50x128xf32> -> vector<50x128xf32>
    %c0_19 = arith.constant 0 : index
    %c0_20 = arith.constant 0 : index
    %19 = vector.load %arg7[%c0_19, %c0_20] : memref<1x128xf32, #tpu.memory_space<vmem>>, vector<1x128xf32>
    %20 = vector.broadcast %19 : vector<1x128xf32> to vector<50x128xf32>
    %21 = arith.addf %20, %18 : vector<50x128xf32>
    %22 = arith.mulf %14, %21 : vector<50x128xf32>
    %cst_21 = arith.constant 1.000000e+00 : f32
    %23 = vector.broadcast %cst_21 : f32 to vector<8x128xf32>
    %cst_22 = arith.constant dense<0.000000e+00> : vector<8x50xf32>
    %24 = tpu.matmul %23, %22, %cst_22 {dimension_numbers = #tpu.dot_dimension_numbers<[1], [1], [0], [0], [0, 0, 1, 0], [], []>} : vector<8x128xf32>, vector<50x128xf32>, vector<8x50xf32> -> vector<8x50xf32>
    %25 = vector.extract_strided_slice %24 {offsets = [0, 0], sizes = [1, 50], strides = [1, 1]} : vector<8x50xf32> to vector<1x50xf32>
    %c0_23 = arith.constant 0 : index
    %c0_24 = arith.constant 0 : index
    %26 = vector.load %arg10[%c0_23, %c0_24] : memref<1x50xf32, #tpu.memory_space<vmem>>, vector<1x50xf32>
    tpu.vector_store %arg10[%c0_23, %c0_24], %25 {strides = array<i32>} : memref<1x50xf32, #tpu.memory_space<vmem>>, vector<1x50xf32>,
    %c0_25 = arith.constant 0 : index
    %c0_26 = arith.constant 0 : index
    %27 = vector.load %arg9[%c0_25, %c0_26] : memref<128x128xf32, #tpu.memory_space<vmem>>, vector<128x128xf32>
    %cst_27 = arith.constant dense<0.000000e+00> : vector<50x128xf32>
    %28 = tpu.matmul %14, %27, %cst_27 {dimension_numbers = #tpu.dot_dimension_numbers<[1], [0], [0], [1], [0, 0, 1, 1], [], []>} : vector<50x128xf32>, vector<128x128xf32>, vector<50x128xf32> -> vector<50x128xf32>
    %c0_28 = arith.constant 0 : index
    %c0_29 = arith.constant 0 : index
    %29 = vector.load %arg12[%c0_28, %c0_29] : memref<50x128xf32, #tpu.memory_space<vmem>>, vector<50x128xf32>
    tpu.vector_store %arg12[%c0_28, %c0_29], %28 {strides = array<i32>} : memref<50x128xf32, #tpu.memory_space<vmem>>, vector<50x128xf32>,
    return
  }
  func.func @transform_0(%arg0: i32) -> (i32, i32) {
    %c0_i32 = arith.constant 0 : i32
    %c0_i32_0 = arith.constant 0 : i32
    return %arg0, %c0_i32 : i32, i32
  }
  func.func @transform_1(%arg0: i32) -> (i32, i32) {
    %c0_i32 = arith.constant 0 : i32
    %c0_i32_0 = arith.constant 0 : i32
    return %arg0, %c0_i32 : i32, i32
  }
  func.func @transform_2(%arg0: i32) -> (i32, i32) {
    %c0_i32 = arith.constant 0 : i32
    %c0_i32_0 = arith.constant 0 : i32
    %c0_i32_1 = arith.constant 0 : i32
    return %c0_i32, %c0_i32_0 : i32, i32
  }
  func.func @transform_3(%arg0: i32) -> (i32, i32) {
    %c0_i32 = arith.constant 0 : i32
    %c0_i32_0 = arith.constant 0 : i32
    %c0_i32_1 = arith.constant 0 : i32
    return %c0_i32, %c0_i32_0 : i32, i32
  }
  func.func @transform_4(%arg0: i32) -> (i32, i32) {
    %c0_i32 = arith.constant 0 : i32
    %c0_i32_0 = arith.constant 0 : i32
    %c0_i32_1 = arith.constant 0 : i32
    return %c0_i32, %c0_i32_0 : i32, i32
  }
  func.func @transform_5(%arg0: i32) -> (i32, i32) {
    %c0_i32 = arith.constant 0 : i32
    %c0_i32_0 = arith.constant 0 : i32
    %c0_i32_1 = arith.constant 0 : i32
    return %c0_i32, %c0_i32_0 : i32, i32
  }
  func.func @transform_6(%arg0: i32) -> (i32, i32) {
    %c0_i32 = arith.constant 0 : i32
    %c0_i32_0 = arith.constant 0 : i32
    %c0_i32_1 = arith.constant 0 : i32
    return %c0_i32, %c0_i32_0 : i32, i32
  }
  func.func @transform_7(%arg0: i32) -> (i32, i32) {
    %c0_i32 = arith.constant 0 : i32
    %c0_i32_0 = arith.constant 0 : i32
    %c0_i32_1 = arith.constant 0 : i32
    return %c0_i32, %c0_i32_0 : i32, i32
  }
  func.func @transform_8(%arg0: i32) -> (i32, i32) {
    %c0_i32 = arith.constant 0 : i32
    %c0_i32_0 = arith.constant 0 : i32
    %c0_i32_1 = arith.constant 0 : i32
    return %c0_i32, %c0_i32_0 : i32, i32
  }
  func.func @transform_9(%arg0: i32) -> (i32, i32) {
    %c0_i32 = arith.constant 0 : i32
    %c0_i32_0 = arith.constant 0 : i32
    return %c0_i32, %arg0 : i32, i32
  }
  func.func @transform_10(%arg0: i32) -> (i32, i32) {
    %c0_i32 = arith.constant 0 : i32
    %c0_i32_0 = arith.constant 0 : i32
    return %arg0, %c0_i32 : i32, i32
  }
  func.func @transform_11(%arg0: i32) -> (i32, i32) {
    %c0_i32 = arith.constant 0 : i32
    %c0_i32_0 = arith.constant 0 : i32
    return %arg0, %c0_i32 : i32, i32
  }
}

</mosaic_0001>

<llo_original>
// kernel: discriminator_rkhs_forward.1
$region0: #{discriminator_rkhs_forward.1}
  #allocation0 [shape = 'u32[]', space=smem, size = 0x4, offset = 0x4, fixed_abs, tag = 'smem constant byte address 0x4 - core index']
  #allocation1 [shape = 'u32[144,128]{1,0:T(1,128)}', space=vmem, size = 0x12000, scoped, tag = 'internal scratch']
  %s0 = inlined_call_operand.vmem [shape: f32[50,128], index: 0, kind: input, shape index: {}]
  %s1 = inlined_call_operand.vmem [shape: f32[50,128], index: 1, kind: input, shape index: {}]
  %s2 = inlined_call_operand.vmem [shape: f32[128,128], index: 2, kind: input, shape index: {}]
  %s3 = inlined_call_operand.vmem [shape: f32[1,128], index: 3, kind: input, shape index: {}]
  %s4 = inlined_call_operand.vmem [shape: f32[128,128], index: 4, kind: input, shape index: {}]
  %s5 = inlined_call_operand.vmem [shape: f32[1,128], index: 5, kind: input, shape index: {}]
  %s6 = inlined_call_operand.vmem [shape: f32[1,128], index: 6, kind: input, shape index: {}]
  %s7 = inlined_call_operand.vmem [shape: f32[128,128], index: 7, kind: input, shape index: {}]
  %s8 = inlined_call_operand.vmem [shape: f32[128,128], index: 8, kind: input, shape index: {}]
  %s9 = inlined_call_operand.hbm [shape: f32[1,50], index: 9, kind: output, shape index: {0}]
  %s10 = inlined_call_operand.hbm [shape: f32[50,128], index: 10, kind: output, shape index: {1}]
  %s11 = inlined_call_operand.hbm [shape: f32[50,128], index: 11, kind: output, shape index: {2}]
  %12 = xla_tuple %s9, %s10, %s11
  %s13 = sld [smem:[#allocation0]]
  $region62: #{discriminator_rkhs_forward.1} parent=0
    _
  %s15 = ssub.s32 1, %s13
  %s16 = scalar_select 0, %s15, %s13
  $region1: #{discriminator_rkhs_forward.1} parent=0
    #allocation2 [shape = 'u8[512]{0}', space=vmem, size = 0x400, scoped, tag = 'output window, operand 0, single buffered']
    #allocation3 [shape = 's32[1]{0}', space=sflag, size = 0x4, scoped, tag = 'scoped memory for discriminator_rkhs_forward.1']
    #allocation4 [shape = 'u8[28672]{0}', space=vmem, size = 0x7000, scoped, tag = 'output window, operand 1, single buffered']
    #allocation5 [shape = 's32[1]{0}', space=sflag, size = 0x4, scoped, tag = 'scoped memory for discriminator_rkhs_forward.1']
    #allocation6 [shape = 'u8[28672]{0}', space=vmem, size = 0x7000, scoped, tag = 'output window, operand 2, single buffered']
    %17 = vsyncpa [#allocation3], 0
    %18 = vsyncpa [#allocation5], 0
    // Predicated region
    $region2: #{discriminator_rkhs_forward.1} parent=1 // pred_check
      _
    $region3: #{discriminator_rkhs_forward.1} parent=1 // pred_check_branch
      %20 = sbr.rel (0) target = $region5
    $region4: #{discriminator_rkhs_forward.1} parent=1 // pred_region
      _
    $region5: #{discriminator_rkhs_forward.1} parent=1 // pred_fallthru
      _
    // Predicated region
    $region6: #{discriminator_rkhs_forward.1} parent=1 // pred_check
      _
    $region7: #{discriminator_rkhs_forward.1} parent=1 // pred_check_branch
      %22 = sbr.rel (0) target = $region9
    $region8: #{discriminator_rkhs_forward.1} parent=1 // pred_region
      _
    $region9: #{discriminator_rkhs_forward.1} parent=1 // pred_fallthru
      _
    // Predicated region
    $region10: #{discriminator_rkhs_forward.1} parent=1 // pred_check
      _
    $region11: #{discriminator_rkhs_forward.1} parent=1 // pred_check_branch
      %24 = sbr.rel (0) target = $region13
    $region12: #{discriminator_rkhs_forward.1} parent=1 // pred_region
      _
    $region13: #{discriminator_rkhs_forward.1} parent=1 // pred_fallthru
      _
    // Predicated region
    $region14: #{discriminator_rkhs_forward.1} parent=1 // pred_check
      _
    $region15: #{discriminator_rkhs_forward.1} parent=1 // pred_check_branch
      %26 = sbr.rel (0) target = $region17
    $region16: #{discriminator_rkhs_forward.1} parent=1 // pred_region
      _
    $region17: #{discriminator_rkhs_forward.1} parent=1 // pred_fallthru
      _
    // Predicated region
    $region18: #{discriminator_rkhs_forward.1} parent=1 // pred_check
      _
    $region19: #{discriminator_rkhs_forward.1} parent=1 // pred_check_branch
      %28 = sbr.rel (0) target = $region21
    $region20: #{discriminator_rkhs_forward.1} parent=1 // pred_region
      _
    $region21: #{discriminator_rkhs_forward.1} parent=1 // pred_fallthru
      _
    // Predicated region
    $region22: #{discriminator_rkhs_forward.1} parent=1 // pred_check
      _
    $region23: #{discriminator_rkhs_forward.1} parent=1 // pred_check_branch
      %30 = sbr.rel (0) target = $region25
    $region24: #{discriminator_rkhs_forward.1} parent=1 // pred_region
      _
    $region25: #{discriminator_rkhs_forward.1} parent=1 // pred_fallthru
      _
    // Predicated region
    $region26: #{discriminator_rkhs_forward.1} parent=1 // pred_check
      _
    $region27: #{discriminator_rkhs_forward.1} parent=1 // pred_check_branch
      %32 = sbr.rel (0) target = $region29
    $region28: #{discriminator_rkhs_forward.1} parent=1 // pred_region
      _
    $region29: #{discriminator_rkhs_forward.1} parent=1 // pred_fallthru
      _
    // Predicated region
    $region30: #{discriminator_rkhs_forward.1} parent=1 // pred_check
      _
    $region31: #{discriminator_rkhs_forward.1} parent=1 // pred_check_branch
      %34 = sbr.rel (0) target = $region33
    $region32: #{discriminator_rkhs_forward.1} parent=1 // pred_region
      _
    $region33: #{discriminator_rkhs_forward.1} parent=1 // pred_fallthru
      _
    // Predicated region
    $region34: #{discriminator_rkhs_forward.1} parent=1 // pred_check
      _
    $region35: #{discriminator_rkhs_forward.1} parent=1 // pred_check_branch
      %36 = sbr.rel (0) target = $region37
    $region36: #{discriminator_rkhs_forward.1} parent=1 // pred_region
      _
    $region37: #{discriminator_rkhs_forward.1} parent=1 // pred_fallthru
      _
    %v37 = vld [vmem:[%s0] sm:$0xff]
    %v38 = vld [vmem:[%s0 + $0x8] sm:$0xff]
    %v39 = vld [vmem:[%s0 + $0x10] sm:$0xff]
    %v40 = vld [vmem:[%s0 + $0x18] sm:$0xff]
    %v41 = vld [vmem:[%s0 + $0x20] sm:$0xff]
    %v42 = vld [vmem:[%s0 + $0x28] sm:$0xff]
    %v43 = vld [vmem:[%s0 + $0x30] sm:$0x3]
    %v44 = vld [vmem:[%s2] sm:$0xff]
    %v45 = vld [vmem:[%s2 + $0x8] sm:$0xff]
    %v46 = vld [vmem:[%s2 + $0x10] sm:$0xff]
    %v47 = vld [vmem:[%s2 + $0x18] sm:$0xff]
    %v48 = vld [vmem:[%s2 + $0x20] sm:$0xff]
    %v49 = vld [vmem:[%s2 + $0x28] sm:$0xff]
    %v50 = vld [vmem:[%s2 + $0x30] sm:$0xff]
    %v51 = vld [vmem:[%s2 + $0x38] sm:$0xff]
    %v52 = vld [vmem:[%s2 + $0x40] sm:$0xff]
    %v53 = vld [vmem:[%s2 + $0x48] sm:$0xff]
    %v54 = vld [vmem:[%s2 + $0x50] sm:$0xff]
    %v55 = vld [vmem:[%s2 + $0x58] sm:$0xff]
    %v56 = vld [vmem:[%s2 + $0x60] sm:$0xff]
    %v57 = vld [vmem:[%s2 + $0x68] sm:$0xff]
    %v58 = vld [vmem:[%s2 + $0x70] sm:$0xff]
    %v59 = vld [vmem:[%s2 + $0x78] sm:$0xff]
    %v60 = vld [vmem:[%s3] sm:$0x1]
    %v62 = vlaneseq
    %v63 = vshrl.u32 %v62, 7
    %v64 = vsub.s32 0, %v63
    %v65 = vrot.slane %v60, %v64
    %67 = vmatprep.subr.mxu0 0.0
    %68 = vmatpush1.msra.mxu0 %v44
    %69 = vmatprep.subr.mxu0 0.0
    %70 = vmatpush1.msra.mxu0 %v45
    %71 = vmatprep.subr.mxu0 0.0
    %72 = vmatpush1.msra.mxu0 %v46
    %73 = vmatprep.subr.mxu0 0.0
    %74 = vmatpush1.msra.mxu0 %v47
    %75 = vmatprep.subr.mxu0 0.0
    %76 = vmatpush1.msra.mxu0 %v48
    %77 = vmatprep.subr.mxu0 0.0
    %78 = vmatpush1.msra.mxu0 %v49
    %79 = vmatprep.subr.mxu0 0.0
    %80 = vmatpush1.msra.mxu0 %v50
    %81 = vmatprep.subr.mxu0 0.0
    %82 = vmatpush1.msra.mxu0 %v51
    %83 = vmatprep.subr.mxu0 0.0
    %84 = vmatpush1.msra.mxu0 %v52
    %85 = vmatprep.subr.mxu0 0.0
    %86 = vmatpush1.msra.mxu0 %v53
    %87 = vmatprep.subr.mxu0 0.0
    %88 = vmatpush1.msra.mxu0 %v54
    %89 = vmatprep.subr.mxu0 0.0
    %90 = vmatpush1.msra.mxu0 %v55
    %91 = vmatprep.subr.mxu0 0.0
    %92 = vmatpush1.msra.mxu0 %v56
    %93 = vmatprep.subr.mxu0 0.0
    %94 = vmatpush1.msra.mxu0 %v57
    %95 = vmatprep.subr.mxu0 0.0
    %96 = vmatpush1.msra.mxu0 %v58
    %97 = vmatprep.subr.mxu0 0.0
    %98 = vmatpush1.msra.mxu0 %v59
    %99 = vmatprep.subr.mxu0 0.0
    %100 = vmatpush1.msra.mxu0 0.0
    %101 = vmatprep.subr.mxu0 0.0
    %102 = vmatpush1.msra.mxu0 0.0
    %103 = vmatprep.subr.mxu0 0.0
    %104 = vmatpush1.msra.mxu0 0.0
    %105 = vmatprep.subr.mxu0 0.0
    %106 = vmatpush1.msra.mxu0 0.0
    %107 = vmatprep.subr.mxu0 0.0
    %108 = vmatpush1.msra.mxu0 0.0
    %109 = vmatprep.subr.mxu0 0.0
    %110 = vmatpush1.msra.mxu0 0.0
    %111 = vmatprep.subr.mxu0 0.0
    %112 = vmatpush1.msra.mxu0 0.0
    %113 = vmatprep.subr.mxu0 0.0
    %114 = vmatpush1.msra.mxu0 0.0
    %115 = vmatprep.subr.mxu0 0.0
    %116 = vmatpush1.msra.mxu0 0.0
    %117 = vmatprep.subr.mxu0 0.0
    %118 = vmatpush1.msra.mxu0 0.0
    %119 = vmatprep.subr.mxu0 0.0
    %120 = vmatpush1.msra.mxu0 0.0
    %121 = vmatprep.subr.mxu0 0.0
    %122 = vmatpush1.msra.mxu0 0.0
    %123 = vmatprep.subr.mxu0 0.0
    %124 = vmatpush1.msra.mxu0 0.0
    %125 = vmatprep.subr.mxu0 0.0
    %126 = vmatpush1.msra.mxu0 0.0
    %127 = vmatprep.subr.mxu0 0.0
    %128 = vmatpush1.msra.mxu0 0.0
    %129 = vmatprep.subr.mxu0 0.0
    %130 = vmatpush1.msra.mxu0 0.0
    %131 = vmatprep.mubr.f32.mxu0 0.0
    %132 = vmatmul.mubr.f32.gmra.mrb[0].mxu0 %v37
    %v133 = vpop.f32.mrb[0].mxu0
    %v134 = vadd.f32 %v65, %v133
    %v135 = vpop.f32.mrb[0].mxu0
    %136 = vmatprep.mubr.f32.mxu0 0.0
    %137 = vmatmul.mubr.f32.gmra.mrb[0].mxu0 %v38
    %v138 = vpop.f32.mrb[0].mxu0
    %v139 = vadd.f32 %v65, %v138
    %v140 = vpop.f32.mrb[0].mxu0
    %141 = vmatprep.mubr.f32.mxu0 0.0
    %142 = vmatmul.mubr.f32.gmra.mrb[0].mxu0 %v39
    %v143 = vpop.f32.mrb[0].mxu0
    %v144 = vadd.f32 %v65, %v143
    %v145 = vpop.f32.mrb[0].mxu0
    %146 = vmatprep.mubr.f32.mxu0 0.0
    %147 = vmatmul.mubr.f32.gmra.mrb[0].mxu0 %v40
    %v148 = vpop.f32.mrb[0].mxu0
    %v149 = vadd.f32 %v65, %v148
    %v150 = vpop.f32.mrb[0].mxu0
    %151 = vmatprep.mubr.f32.mxu0 0.0
    %152 = vmatmul.mubr.f32.gmra.mrb[0].mxu0 %v41
    %v153 = vpop.f32.mrb[0].mxu0
    %v154 = vadd.f32 %v65, %v153
    %v155 = vpop.f32.mrb[0].mxu0
    %156 = vmatprep.mubr.f32.mxu0 0.0
    %157 = vmatmul.mubr.f32.gmra.mrb[0].mxu0 %v42
    %v158 = vpop.f32.mrb[0].mxu0
    %v159 = vadd.f32 %v65, %v158
    %v160 = vpop.f32.mrb[0].mxu0
    %161 = vmatprep.mubr.f32.mxu0 0.0
    %162 = vmatmul.mubr.f32.gmra.mrb[0].mxu0 %v43
    %v163 = vpop.f32.mrb[0].mxu0
    %v164 = vadd.f32 %v65, %v163
    %v165 = vpop.f32.mrb[0].mxu0
    %166 = vdwg.mxu0
    %v167 = vmax.f32 %v134, 0.0
    %v168 = vmax.f32 %v139, 0.0
    %v169 = vmax.f32 %v144, 0.0
    %v170 = vmax.f32 %v149, 0.0
    %v171 = vmax.f32 %v154, 0.0
    %v172 = vmax.f32 %v159, 0.0
    %v173 = vmax.f32 %v164, 0.0
    %v174 = vld [vmem:[%s4] sm:$0xff]
    %v175 = vld [vmem:[%s4 + $0x8] sm:$0xff]
    %v176 = vld [vmem:[%s4 + $0x10] sm:$0xff]
    %v177 = vld [vmem:[%s4 + $0x18] sm:$0xff]
    %v178 = vld [vmem:[%s4 + $0x20] sm:$0xff]
    %v179 = vld [vmem:[%s4 + $0x28] sm:$0xff]
    %v180 = vld [vmem:[%s4 + $0x30] sm:$0xff]
    %v181 = vld [vmem:[%s4 + $0x38] sm:$0xff]
    %v182 = vld [vmem:[%s4 + $0x40] sm:$0xff]
    %v183 = vld [vmem:[%s4 + $0x48] sm:$0xff]
    %v184 = vld [vmem:[%s4 + $0x50] sm:$0xff]
    %v185 = vld [vmem:[%s4 + $0x58] sm:$0xff]
    %v186 = vld [vmem:[%s4 + $0x60] sm:$0xff]
    %v187 = vld [vmem:[%s4 + $0x68] sm:$0xff]
    %v188 = vld [vmem:[%s4 + $0x70] sm:$0xff]
    %v189 = vld [vmem:[%s4 + $0x78] sm:$0xff]
    %v190 = vld [vmem:[%s5] sm:$0x1]
    %v192 = vlaneseq
    %v193 = vshrl.u32 %v192, 7
    %v194 = vsub.s32 0, %v193
    %v195 = vrot.slane %v190, %v194
    %197 = vmatprep.subr.mxu0 0.0
    %198 = vmatpush1.msra.mxu0 %v174
    %199 = vmatprep.subr.mxu0 0.0
    %200 = vmatpush1.msra.mxu0 %v175
    %201 = vmatprep.subr.mxu0 0.0
    %202 = vmatpush1.msra.mxu0 %v176
    %203 = vmatprep.subr.mxu0 0.0
    %204 = vmatpush1.msra.mxu0 %v177
    %205 = vmatprep.subr.mxu0 0.0
    %206 = vmatpush1.msra.mxu0 %v178
    %207 = vmatprep.subr.mxu0 0.0
    %208 = vmatpush1.msra.mxu0 %v179
    %209 = vmatprep.subr.mxu0 0.0
    %210 = vmatpush1.msra.mxu0 %v180
    %211 = vmatprep.subr.mxu0 0.0
    %212 = vmatpush1.msra.mxu0 %v181
    %213 = vmatprep.subr.mxu0 0.0
    %214 = vmatpush1.msra.mxu0 %v182
    %215 = vmatprep.subr.mxu0 0.0
    %216 = vmatpush1.msra.mxu0 %v183
    %217 = vmatprep.subr.mxu0 0.0
    %218 = vmatpush1.msra.mxu0 %v184
    %219 = vmatprep.subr.mxu0 0.0
    %220 = vmatpush1.msra.mxu0 %v185
    %221 = vmatprep.subr.mxu0 0.0
    %222 = vmatpush1.msra.mxu0 %v186
    %223 = vmatprep.subr.mxu0 0.0
    %224 = vmatpush1.msra.mxu0 %v187
    %225 = vmatprep.subr.mxu0 0.0
    %226 = vmatpush1.msra.mxu0 %v188
    %227 = vmatprep.subr.mxu0 0.0
    %228 = vmatpush1.msra.mxu0 %v189
    %229 = vmatprep.subr.mxu0 0.0
    %230 = vmatpush1.msra.mxu0 0.0
    %231 = vmatprep.subr.mxu0 0.0
    %232 = vmatpush1.msra.mxu0 0.0
    %233 = vmatprep.subr.mxu0 0.0
    %234 = vmatpush1.msra.mxu0 0.0
    %235 = vmatprep.subr.mxu0 0.0
    %236 = vmatpush1.msra.mxu0 0.0
    %237 = vmatprep.subr.mxu0 0.0
    %238 = vmatpush1.msra.mxu0 0.0
    %239 = vmatprep.subr.mxu0 0.0
    %240 = vmatpush1.msra.mxu0 0.0
    %241 = vmatprep.subr.mxu0 0.0
    %242 = vmatpush1.msra.mxu0 0.0
    %243 = vmatprep.subr.mxu0 0.0
    %244 = vmatpush1.msra.mxu0 0.0
    %245 = vmatprep.subr.mxu0 0.0
    %246 = vmatpush1.msra.mxu0 0.0
    %247 = vmatprep.subr.mxu0 0.0
    %248 = vmatpush1.msra.mxu0 0.0
    %249 = vmatprep.subr.mxu0 0.0
    %250 = vmatpush1.msra.mxu0 0.0
    %251 = vmatprep.subr.mxu0 0.0
    %252 = vmatpush1.msra.mxu0 0.0
    %253 = vmatprep.subr.mxu0 0.0
    %254 = vmatpush1.msra.mxu0 0.0
    %255 = vmatprep.subr.mxu0 0.0
    %256 = vmatpush1.msra.mxu0 0.0
    %257 = vmatprep.subr.mxu0 0.0
    %258 = vmatpush1.msra.mxu0 0.0
    %259 = vmatprep.subr.mxu0 0.0
    %260 = vmatpush1.msra.mxu0 0.0
    %261 = vmatprep.mubr.f32.mxu0 0.0
    %262 = vmatmul.mubr.f32.gmra.mrb[0].mxu0 %v167
    %v263 = vpop.f32.mrb[0].mxu0
    %v264 = vadd.f32 %v195, %v263
    %v265 = vpop.f32.mrb[0].mxu0
    %266 = vmatprep.mubr.f32.mxu0 0.0
    %267 = vmatmul.mubr.f32.gmra.mrb[0].mxu0 %v168
    %v268 = vpop.f32.mrb[0].mxu0
    %v269 = vadd.f32 %v195, %v268
    %v270 = vpop.f32.mrb[0].mxu0
    %271 = vmatprep.mubr.f32.mxu0 0.0
    %272 = vmatmul.mubr.f32.gmra.mrb[0].mxu0 %v169
    %v273 = vpop.f32.mrb[0].mxu0
    %v274 = vadd.f32 %v195, %v273
    %v275 = vpop.f32.mrb[0].mxu0
    %276 = vmatprep.mubr.f32.mxu0 0.0
    %277 = vmatmul.mubr.f32.gmra.mrb[0].mxu0 %v170
    %v278 = vpop.f32.mrb[0].mxu0
    %v279 = vadd.f32 %v195, %v278
    %v280 = vpop.f32.mrb[0].mxu0
    %281 = vmatprep.mubr.f32.mxu0 0.0
    %282 = vmatmul.mubr.f32.gmra.mrb[0].mxu0 %v171
    %v283 = vpop.f32.mrb[0].mxu0
    %v284 = vadd.f32 %v195, %v283
    %v285 = vpop.f32.mrb[0].mxu0
    %286 = vmatprep.mubr.f32.mxu0 0.0
    %287 = vmatmul.mubr.f32.gmra.mrb[0].mxu0 %v172
    %v288 = vpop.f32.mrb[0].mxu0
    %v289 = vadd.f32 %v195, %v288
    %v290 = vpop.f32.mrb[0].mxu0
    %291 = vmatprep.mubr.f32.mxu0 0.0
    %292 = vmatmul.mubr.f32.gmra.mrb[0].mxu0 %v173
    %v293 = vpop.f32.mrb[0].mxu0
    %v294 = vadd.f32 %v195, %v293
    %v295 = vpop.f32.mrb[0].mxu0
    %296 = vdwg.mxu0
    %v297 = vmax.f32 %v264, 0.0
    %v298 = vmax.f32 %v269, 0.0
    %v299 = vmax.f32 %v274, 0.0
    %v300 = vmax.f32 %v279, 0.0
    %v301 = vmax.f32 %v284, 0.0
    %v302 = vmax.f32 %v289, 0.0
    %v303 = vmax.f32 %v294, 0.0
    %304 = vst [vmem:[#allocation4] sm:$0xff] %v297
    %305 = vst [vmem:[#allocation4 + $0x8] sm:$0xff] %v298
    %306 = vst [vmem:[#allocation4 + $0x10] sm:$0xff] %v299
    %307 = vst [vmem:[#allocation4 + $0x18] sm:$0xff] %v300
    %308 = vst [vmem:[#allocation4 + $0x20] sm:$0xff] %v301
    %309 = vst [vmem:[#allocation4 + $0x28] sm:$0xff] %v302
    %310 = vst [vmem:[#allocation4 + $0x30] sm:$0x3] %v303
    %v311 = vld [vmem:[%s1] sm:$0xff]
    %v312 = vld [vmem:[%s1 + $0x8] sm:$0xff]
    %v313 = vld [vmem:[%s1 + $0x10] sm:$0xff]
    %v314 = vld [vmem:[%s1 + $0x18] sm:$0xff]
    %v315 = vld [vmem:[%s1 + $0x20] sm:$0xff]
    %v316 = vld [vmem:[%s1 + $0x28] sm:$0xff]
    %v317 = vld [vmem:[%s1 + $0x30] sm:$0x3]
    %v318 = vld [vmem:[%s7] sm:$0xff]
    %v319 = vld [vmem:[%s7 + $0x8] sm:$0xff]
    %v320 = vld [vmem:[%s7 + $0x10] sm:$0xff]
    %v321 = vld [vmem:[%s7 + $0x18] sm:$0xff]
    %v322 = vld [vmem:[%s7 + $0x20] sm:$0xff]
    %v323 = vld [vmem:[%s7 + $0x28] sm:$0xff]
    %v324 = vld [vmem:[%s7 + $0x30] sm:$0xff]
    %v325 = vld [vmem:[%s7 + $0x38] sm:$0xff]
    %v326 = vld [vmem:[%s7 + $0x40] sm:$0xff]
    %v327 = vld [vmem:[%s7 + $0x48] sm:$0xff]
    %v328 = vld [vmem:[%s7 + $0x50] sm:$0xff]
    %v329 = vld [vmem:[%s7 + $0x58] sm:$0xff]
    %v330 = vld [vmem:[%s7 + $0x60] sm:$0xff]
    %v331 = vld [vmem:[%s7 + $0x68] sm:$0xff]
    %v332 = vld [vmem:[%s7 + $0x70] sm:$0xff]
    %v333 = vld [vmem:[%s7 + $0x78] sm:$0xff]
    %334 = vmatprep.subr.mxu0 0.0
    %335 = vmatpush1.msra.mxu0 %v318
    %336 = vmatprep.subr.mxu0 0.0
    %337 = vmatpush1.msra.mxu0 %v319
    %338 = vmatprep.subr.mxu0 0.0
    %339 = vmatpush1.msra.mxu0 %v320
    %340 = vmatprep.subr.mxu0 0.0
    %341 = vmatpush1.msra.mxu0 %v321
    %342 = vmatprep.subr.mxu0 0.0
    %343 = vmatpush1.msra.mxu0 %v322
    %344 = vmatprep.subr.mxu0 0.0
    %345 = vmatpush1.msra.mxu0 %v323
    %346 = vmatprep.subr.mxu0 0.0
    %347 = vmatpush1.msra.mxu0 %v324
    %348 = vmatprep.subr.mxu0 0.0
    %349 = vmatpush1.msra.mxu0 %v325
    %350 = vmatprep.subr.mxu0 0.0
    %351 = vmatpush1.msra.mxu0 %v326
    %352 = vmatprep.subr.mxu0 0.0
    %353 = vmatpush1.msra.mxu0 %v327
    %354 = vmatprep.subr.mxu0 0.0
    %355 = vmatpush1.msra.mxu0 %v328
    %356 = vmatprep.subr.mxu0 0.0
    %357 = vmatpush1.msra.mxu0 %v329
    %358 = vmatprep.subr.mxu0 0.0
    %359 = vmatpush1.msra.mxu0 %v330
    %360 = vmatprep.subr.mxu0 0.0
    %361 = vmatpush1.msra.mxu0 %v331
    %362 = vmatprep.subr.mxu0 0.0
    %363 = vmatpush1.msra.mxu0 %v332
    %364 = vmatprep.subr.mxu0 0.0
    %365 = vmatpush1.msra.mxu0 %v333
    %366 = vmatprep.subr.mxu0 0.0
    %367 = vmatpush1.msra.mxu0 0.0
    %368 = vmatprep.subr.mxu0 0.0
    %369 = vmatpush1.msra.mxu0 0.0
    %370 = vmatprep.subr.mxu0 0.0
    %371 = vmatpush1.msra.mxu0 0.0
    %372 = vmatprep.subr.mxu0 0.0
    %373 = vmatpush1.msra.mxu0 0.0
    %374 = vmatprep.subr.mxu0 0.0
    %375 = vmatpush1.msra.mxu0 0.0
    %376 = vmatprep.subr.mxu0 0.0
    %377 = vmatpush1.msra.mxu0 0.0
    %378 = vmatprep.subr.mxu0 0.0
    %379 = vmatpush1.msra.mxu0 0.0
    %380 = vmatprep.subr.mxu0 0.0
    %381 = vmatpush1.msra.mxu0 0.0
    %382 = vmatprep.subr.mxu0 0.0
    %383 = vmatpush1.msra.mxu0 0.0
    %384 = vmatprep.subr.mxu0 0.0
    %385 = vmatpush1.msra.mxu0 0.0
    %386 = vmatprep.subr.mxu0 0.0
    %387 = vmatpush1.msra.mxu0 0.0
    %388 = vmatprep.subr.mxu0 0.0
    %389 = vmatpush1.msra.mxu0 0.0
    %390 = vmatprep.subr.mxu0 0.0
    %391 = vmatpush1.msra.mxu0 0.0
    %392 = vmatprep.subr.mxu0 0.0
    %393 = vmatpush1.msra.mxu0 0.0
    %394 = vmatprep.subr.mxu0 0.0
    %395 = vmatpush1.msra.mxu0 0.0
    %396 = vmatprep.subr.mxu0 0.0
    %397 = vmatpush1.msra.mxu0 0.0
    %398 = vmatprep.mubr.f32.mxu0 0.0
    %399 = vmatmul.mubr.f32.gmra.mrb[0].mxu0 %v311
    %v400 = vpop.f32.mrb[0].mxu0
    %v401 = vadd.f32 0.0, %v400
    %v402 = vpop.f32.mrb[0].mxu0
    %403 = vmatprep.mubr.f32.mxu0 0.0
    %404 = vmatmul.mubr.f32.gmra.mrb[0].mxu0 %v312
    %v405 = vpop.f32.mrb[0].mxu0
    %v406 = vadd.f32 0.0, %v405
    %v407 = vpop.f32.mrb[0].mxu0
    %408 = vmatprep.mubr.f32.mxu0 0.0
    %409 = vmatmul.mubr.f32.gmra.mrb[0].mxu0 %v313
    %v410 = vpop.f32.mrb[0].mxu0
    %v411 = vadd.f32 0.0, %v410
    %v412 = vpop.f32.mrb[0].mxu0
    %413 = vmatprep.mubr.f32.mxu0 0.0
    %414 = vmatmul.mubr.f32.gmra.mrb[0].mxu0 %v314
    %v415 = vpop.f32.mrb[0].mxu0
    %v416 = vadd.f32 0.0, %v415
    %v417 = vpop.f32.mrb[0].mxu0
    %418 = vmatprep.mubr.f32.mxu0 0.0
    %419 = vmatmul.mubr.f32.gmra.mrb[0].mxu0 %v315
    %v420 = vpop.f32.mrb[0].mxu0
    %v421 = vadd.f32 0.0, %v420
    %v422 = vpop.f32.mrb[0].mxu0
    %423 = vmatprep.mubr.f32.mxu0 0.0
    %424 = vmatmul.mubr.f32.gmra.mrb[0].mxu0 %v316
    %v425 = vpop.f32.mrb[0].mxu0
    %v426 = vadd.f32 0.0, %v425
    %v427 = vpop.f32.mrb[0].mxu0
    %428 = vmatprep.mubr.f32.mxu0 0.0
    %429 = vmatmul.mubr.f32.gmra.mrb[0].mxu0 %v317
    %v430 = vpop.f32.mrb[0].mxu0
    %v431 = vadd.f32 0.0, %v430
    %v432 = vpop.f32.mrb[0].mxu0
    %433 = vdwg.mxu0
    %v434 = vld [vmem:[%s6] sm:$0x1]
    %v436 = vlaneseq
    %v437 = vshrl.u32 %v436, 7
    %v438 = vsub.s32 0, %v437
    %v439 = vrot.slane %v434, %v438
    %v441 = vadd.f32 %v439, %v401
    %v442 = vadd.f32 %v439, %v406
    %v443 = vadd.f32 %v439, %v411
    %v444 = vadd.f32 %v439, %v416
    %v445 = vadd.f32 %v439, %v421
    %v446 = vadd.f32 %v439, %v426
    %v447 = vadd.f32 %v439, %v431
    %v448 = vmul.f32 %v297, %v441
    %v449 = vmul.f32 %v298, %v442
    %v450 = vmul.f32 %v299, %v443
    %v451 = vmul.f32 %v300, %v444
    %v452 = vmul.f32 %v301, %v445
    %v453 = vmul.f32 %v302, %v446
    %v454 = vmul.f32 %v303, %v447
    %455 = vmatprep.subr.mxu0 0.0
    %456 = vmatpush1.xpose.msra.mxu0 %v448
    %457 = vmatprep.subr.mxu0 0.0
    %458 = vmatpush1.xpose.msra.mxu0 %v449
    %459 = vmatprep.subr.mxu0 0.0
    %460 = vmatpush1.xpose.msra.mxu0 %v450
    %461 = vmatprep.subr.mxu0 0.0
    %462 = vmatpush1.xpose.msra.mxu0 %v451
    %463 = vmatprep.subr.mxu0 0.0
    %464 = vmatpush1.xpose.msra.mxu0 %v452
    %465 = vmatprep.subr.mxu0 0.0
    %466 = vmatpush1.xpose.msra.mxu0 %v453
    %467 = vmatprep.subr.mxu0 0.0
    %468 = vmatpush1.xpose.msra.mxu0 %v454
    %469 = vmatprep.subr.mxu0 0.0
    %470 = vmatpush1.xpose.msra.mxu0 0.0
    %471 = vmatprep.subr.mxu0 0.0
    %472 = vmatpush1.xpose.msra.mxu0 0.0
    %473 = vmatprep.subr.mxu0 0.0
    %474 = vmatpush1.xpose.msra.mxu0 0.0
    %475 = vmatprep.subr.mxu0 0.0
    %476 = vmatpush1.xpose.msra.mxu0 0.0
    %477 = vmatprep.subr.mxu0 0.0
    %478 = vmatpush1.xpose.msra.mxu0 0.0
    %479 = vmatprep.subr.mxu0 0.0
    %480 = vmatpush1.xpose.msra.mxu0 0.0
    %481 = vmatprep.subr.mxu0 0.0
    %482 = vmatpush1.xpose.msra.mxu0 0.0
    %483 = vmatprep.subr.mxu0 0.0
    %484 = vmatpush1.xpose.msra.mxu0 0.0
    %485 = vmatprep.subr.mxu0 0.0
    %486 = vmatpush1.xpose.msra.mxu0 0.0
    %487 = vmatprep.subr.mxu0 0.0
    %488 = vmatpush1.xpose.msra.mxu0 0.0
    %489 = vmatprep.subr.mxu0 0.0
    %490 = vmatpush1.xpose.msra.mxu0 0.0
    %491 = vmatprep.subr.mxu0 0.0
    %492 = vmatpush1.xpose.msra.mxu0 0.0
    %493 = vmatprep.subr.mxu0 0.0
    %494 = vmatpush1.xpose.msra.mxu0 0.0
    %495 = vmatprep.subr.mxu0 0.0
    %496 = vmatpush1.xpose.msra.mxu0 0.0
    %497 = vmatprep.subr.mxu0 0.0
    %498 = vmatpush1.xpose.msra.mxu0 0.0
    %499 = vmatprep.subr.mxu0 0.0
    %500 = vmatpush1.xpose.msra.mxu0 0.0
    %501 = vmatprep.subr.mxu0 0.0
    %502 = vmatpush1.xpose.msra.mxu0 0.0
    %503 = vmatprep.subr.mxu0 0.0
    %504 = vmatpush1.xpose.msra.mxu0 0.0
    %505 = vmatprep.subr.mxu0 0.0
    %506 = vmatpush1.xpose.msra.mxu0 0.0
    %507 = vmatprep.subr.mxu0 0.0
    %508 = vmatpush1.xpose.msra.mxu0 0.0
    %509 = vmatprep.subr.mxu0 0.0
    %510 = vmatpush1.xpose.msra.mxu0 0.0
    %511 = vmatprep.subr.mxu0 0.0
    %512 = vmatpush1.xpose.msra.mxu0 0.0
    %513 = vmatprep.subr.mxu0 0.0
    %514 = vmatpush1.xpose.msra.mxu0 0.0
    %515 = vmatprep.subr.mxu0 0.0
    %516 = vmatpush1.xpose.msra.mxu0 0.0
    %517 = vmatprep.subr.mxu0 0.0
    %518 = vmatpush1.xpose.msra.mxu0 0.0
    %519 = vmatprep.mubr.f32.mxu0 0.0
    %520 = vmatmul.mubr.f32.gmra.mrb[0].mxu0 1.0
    %v521 = vpop.f32.mrb[0].mxu0
    %v522 = vadd.f32 0.0, %v521
    %v523 = vpop.f32.mrb[0].mxu0
    %524 = vdwg.mxu0
    %vm525 = vcmask 401408
    %526 = vst.msk [vmem:[#allocation2] sm:$0x1] %vm525, %v522
    %v527 = vld [vmem:[%s8] sm:$0xff]
    %v528 = vld [vmem:[%s8 + $0x8] sm:$0xff]
    %v529 = vld [vmem:[%s8 + $0x10] sm:$0xff]
    %v530 = vld [vmem:[%s8 + $0x18] sm:$0xff]
    %v531 = vld [vmem:[%s8 + $0x20] sm:$0xff]
    %v532 = vld [vmem:[%s8 + $0x28] sm:$0xff]
    %v533 = vld [vmem:[%s8 + $0x30] sm:$0xff]
    %v534 = vld [vmem:[%s8 + $0x38] sm:$0xff]
    %v535 = vld [vmem:[%s8 + $0x40] sm:$0xff]
    %v536 = vld [vmem:[%s8 + $0x48] sm:$0xff]
    %v537 = vld [vmem:[%s8 + $0x50] sm:$0xff]
    %v538 = vld [vmem:[%s8 + $0x58] sm:$0xff]
    %v539 = vld [vmem:[%s8 + $0x60] sm:$0xff]
    %v540 = vld [vmem:[%s8 + $0x68] sm:$0xff]
    %v541 = vld [vmem:[%s8 + $0x70] sm:$0xff]
    %v542 = vld [vmem:[%s8 + $0x78] sm:$0xff]
    %543 = vmatprep.subr.mxu0 0.0
    %544 = vmatpush1.msra.mxu0 %v527
    %545 = vmatprep.subr.mxu0 0.0
    %546 = vmatpush1.msra.mxu0 %v528
    %547 = vmatprep.subr.mxu0 0.0
    %548 = vmatpush1.msra.mxu0 %v529
    %549 = vmatprep.subr.mxu0 0.0
    %550 = vmatpush1.msra.mxu0 %v530
    %551 = vmatprep.subr.mxu0 0.0
    %552 = vmatpush1.msra.mxu0 %v531
    %553 = vmatprep.subr.mxu0 0.0
    %554 = vmatpush1.msra.mxu0 %v532
    %555 = vmatprep.subr.mxu0 0.0
    %556 = vmatpush1.msra.mxu0 %v533
    %557 = vmatprep.subr.mxu0 0.0
    %558 = vmatpush1.msra.mxu0 %v534
    %559 = vmatprep.subr.mxu0 0.0
    %560 = vmatpush1.msra.mxu0 %v535
    %561 = vmatprep.subr.mxu0 0.0
    %562 = vmatpush1.msra.mxu0 %v536
    %563 = vmatprep.subr.mxu0 0.0
    %564 = vmatpush1.msra.mxu0 %v537
    %565 = vmatprep.subr.mxu0 0.0
    %566 = vmatpush1.msra.mxu0 %v538
    %567 = vmatprep.subr.mxu0 0.0
    %568 = vmatpush1.msra.mxu0 %v539
    %569 = vmatprep.subr.mxu0 0.0
    %570 = vmatpush1.msra.mxu0 %v540
    %571 = vmatprep.subr.mxu0 0.0
    %572 = vmatpush1.msra.mxu0 %v541
    %573 = vmatprep.subr.mxu0 0.0
    %574 = vmatpush1.msra.mxu0 %v542
    %575 = vmatprep.subr.mxu0 0.0
    %576 = vmatpush1.msra.mxu0 0.0
    %577 = vmatprep.subr.mxu0 0.0
    %578 = vmatpush1.msra.mxu0 0.0
    %579 = vmatprep.subr.mxu0 0.0
    %580 = vmatpush1.msra.mxu0 0.0
    %581 = vmatprep.subr.mxu0 0.0
    %582 = vmatpush1.msra.mxu0 0.0
    %583 = vmatprep.subr.mxu0 0.0
    %584 = vmatpush1.msra.mxu0 0.0
    %585 = vmatprep.subr.mxu0 0.0
    %586 = vmatpush1.msra.mxu0 0.0
    %587 = vmatprep.subr.mxu0 0.0
    %588 = vmatpush1.msra.mxu0 0.0
    %589 = vmatprep.subr.mxu0 0.0
    %590 = vmatpush1.msra.mxu0 0.0
    %591 = vmatprep.subr.mxu0 0.0
    %592 = vmatpush1.msra.mxu0 0.0
    %593 = vmatprep.subr.mxu0 0.0
    %594 = vmatpush1.msra.mxu0 0.0
    %595 = vmatprep.subr.mxu0 0.0
    %596 = vmatpush1.msra.mxu0 0.0
    %597 = vmatprep.subr.mxu0 0.0
    %598 = vmatpush1.msra.mxu0 0.0
    %599 = vmatprep.subr.mxu0 0.0
    %600 = vmatpush1.msra.mxu0 0.0
    %601 = vmatprep.subr.mxu0 0.0
    %602 = vmatpush1.msra.mxu0 0.0
    %603 = vmatprep.subr.mxu0 0.0
    %604 = vmatpush1.msra.mxu0 0.0
    %605 = vmatprep.subr.mxu0 0.0
    %606 = vmatpush1.msra.mxu0 0.0
    %607 = vmatprep.mubr.f32.mxu0 0.0
    %608 = vmatmul.mubr.f32.gmra.mrb[0].mxu0 %v297
    %v609 = vpop.f32.mrb[0].mxu0
    %v610 = vadd.f32 0.0, %v609
    %v611 = vpop.f32.mrb[0].mxu0
    %612 = vmatprep.mubr.f32.mxu0 0.0
    %613 = vmatmul.mubr.f32.gmra.mrb[0].mxu0 %v298
    %v614 = vpop.f32.mrb[0].mxu0
    %v615 = vadd.f32 0.0, %v614
    %v616 = vpop.f32.mrb[0].mxu0
    %617 = vmatprep.mubr.f32.mxu0 0.0
    %618 = vmatmul.mubr.f32.gmra.mrb[0].mxu0 %v299
    %v619 = vpop.f32.mrb[0].mxu0
    %v620 = vadd.f32 0.0, %v619
    %v621 = vpop.f32.mrb[0].mxu0
    %622 = vmatprep.mubr.f32.mxu0 0.0
    %623 = vmatmul.mubr.f32.gmra.mrb[0].mxu0 %v300
    %v624 = vpop.f32.mrb[0].mxu0
    %v625 = vadd.f32 0.0, %v624
    %v626 = vpop.f32.mrb[0].mxu0
    %627 = vmatprep.mubr.f32.mxu0 0.0
    %628 = vmatmul.mubr.f32.gmra.mrb[0].mxu0 %v301
    %v629 = vpop.f32.mrb[0].mxu0
    %v630 = vadd.f32 0.0, %v629
    %v631 = vpop.f32.mrb[0].mxu0
    %632 = vmatprep.mubr.f32.mxu0 0.0
    %633 = vmatmul.mubr.f32.gmra.mrb[0].mxu0 %v302
    %v634 = vpop.f32.mrb[0].mxu0
    %v635 = vadd.f32 0.0, %v634
    %v636 = vpop.f32.mrb[0].mxu0
    %637 = vmatprep.mubr.f32.mxu0 0.0
    %638 = vmatmul.mubr.f32.gmra.mrb[0].mxu0 %v303
    %v639 = vpop.f32.mrb[0].mxu0
    %v640 = vadd.f32 0.0, %v639
    %v641 = vpop.f32.mrb[0].mxu0
    %642 = vdwg.mxu0
    %643 = vst [vmem:[#allocation6] sm:$0xff] %v610
    %644 = vst [vmem:[#allocation6 + $0x8] sm:$0xff] %v615
    %645 = vst [vmem:[#allocation6 + $0x10] sm:$0xff] %v620
    %646 = vst [vmem:[#allocation6 + $0x18] sm:$0xff] %v625
    %647 = vst [vmem:[#allocation6 + $0x20] sm:$0xff] %v630
    %648 = vst [vmem:[#allocation6 + $0x28] sm:$0xff] %v635
    %649 = vst [vmem:[#allocation6 + $0x30] sm:$0x3] %v640
    // Predicated region
    $region38: #{discriminator_rkhs_forward.1} parent=1 // pred_check
      _
    $region39: #{discriminator_rkhs_forward.1} parent=1 // pred_check_branch
      %651 = sbr.rel (0) target = $region41
    $region40: #{discriminator_rkhs_forward.1} parent=1 // pred_region
      %s653 = ssub.s32 16, 16
      %654 = vsyncadd [#allocation3], %s653
      %s656 = sshll.u32 [#allocation2], 4
      %s657 = int_to_ptr.vmem [resolvable:$true] %s656
      %659 = dma.vmem_to_hbm [thread:$0]  %s657, 16, %s9, [#allocation3]
    $region41: #{discriminator_rkhs_forward.1} parent=1 // pred_fallthru
      _
    // Predicated region
    $region42: #{discriminator_rkhs_forward.1} parent=1 // pred_check
      _
    $region43: #{discriminator_rkhs_forward.1} parent=1 // pred_check_branch
      %661 = sbr.rel (0) target = $region45
    $region44: #{discriminator_rkhs_forward.1} parent=1 // pred_region
      %s663 = ssub.s32 896, 896
      %664 = vsyncadd [#allocation5], %s663
      %s665 = sshll.u32 [#allocation4], 4
      %s666 = int_to_ptr.vmem [resolvable:$true] %s665
      %671 = dma.vmem_to_hbm [thread:$0]  %s666, 896, %s10, [#allocation5], 128, 128, 8
    $region45: #{discriminator_rkhs_forward.1} parent=1 // pred_fallthru
      _
    // Predicated region
    $region46: #{discriminator_rkhs_forward.1} parent=1 // pred_check
      _
    $region47: #{discriminator_rkhs_forward.1} parent=1 // pred_check_branch
      %673 = sbr.rel (0) target = $region49
    $region48: #{discriminator_rkhs_forward.1} parent=1 // pred_region
      %s675 = ssub.s32 896, 896
      %676 = vsyncadd [#allocation5], %s675
      %s677 = sshll.u32 [#allocation6], 4
      %s678 = int_to_ptr.vmem [resolvable:$true] %s677
      %683 = dma.vmem_to_hbm [thread:$0]  %s678, 896, %s11, [#allocation5], 128, 128, 8
    $region49: #{discriminator_rkhs_forward.1} parent=1 // pred_fallthru
      _
    // Predicated region
    $region50: #{discriminator_rkhs_forward.1} parent=1 // pred_check
      _
    $region51: #{discriminator_rkhs_forward.1} parent=1 // pred_check_branch
      %685 = sbr.rel (0) target = $region53
    $region52: #{discriminator_rkhs_forward.1} parent=1 // pred_region
      %686 = dma.done [#allocation3], 16
    $region53: #{discriminator_rkhs_forward.1} parent=1 // pred_fallthru
      _
    // Predicated region
    $region54: #{discriminator_rkhs_forward.1} parent=1 // pred_check
      _
    $region55: #{discriminator_rkhs_forward.1} parent=1 // pred_check_branch
      %688 = sbr.rel (0) target = $region57
    $region56: #{discriminator_rkhs_forward.1} parent=1 // pred_region
      %689 = dma.done [#allocation5], 896
    $region57: #{discriminator_rkhs_forward.1} parent=1 // pred_fallthru
      _
    // Predicated region
    $region58: #{discriminator_rkhs_forward.1} parent=1 // pred_check
      _
    $region59: #{discriminator_rkhs_forward.1} parent=1 // pred_check_branch
      %691 = sbr.rel (0) target = $region61
    $region60: #{discriminator_rkhs_forward.1} parent=1 // pred_region
      %692 = dma.done [#allocation5], 896
    $region61: #{discriminator_rkhs_forward.1} parent=1 // pred_fallthru
      _
    %693 = vsyncpa [#allocation3], 1
    %694 = vsyncpa [#allocation5], 1

</llo_original>
